<compile_context>
chip_gen: v7x
topology: tpu7x:2x2x1
jax: 0.10.0
libtpu: 0.0.40
codegen_flags: <defaults>
</compile_context>

<pallas_src>
import jax
import jax.numpy as jnp
from jax import lax
from jax.experimental import pallas as pl
from jax.experimental.pallas import tpu as pltpu


_NT_DIMS = (((1,), (1,)), ((), ()))   # contract last dim of both operands (A @ B^T)


def _round_up(x, m):
    return ((x + m - 1) // m) * m


def _dot_nt(v8, h):
    """(8, n_h) @ (tile_n, n_h)^T -> (1, tile_n) score row, f32 accumulate.

    The RHS stays in its native HBM dtype (bf16 stays bf16); the tiny LHS is
    cast down to match so the MXU gets a uniform low-precision feed with f32
    accumulation.  For f32 inputs both operands are f32 (same numeric path
    that validated previously).
    """
    lhs = v8 if v8.dtype == h.dtype else v8.astype(h.dtype)
    d = lax.dot_general(lhs, h, _NT_DIMS, preferred_element_type=jnp.float32)
    return d[0:1, :]           # all 8 rows identical; keep row 0 (lane-major)


def _scores_body(v8_ref, h_pl_ref, h_mi_ref, bias_ref, out_ref,
                 sb1_ref=None, sb2_ref=None):
    v8 = v8_ref[...]                      # (8, n_h), grid-invariant, f32
    b = bias_ref[0, 0]                    # scalar bias from SMEM

    sc1 = _dot_nt(v8, h_pl_ref[...]) + b  # (1, tile_n) lane-dense
    sc2 = _dot_nt(v8, h_mi_ref[...]) + b
    if sb1_ref is not None:
        sc1 = sc1 + sb1_ref[...]
        sc2 = sc2 + sb2_ref[...]

    out_ref[0:1, :] = sc1                 # row 0 = sc_1
    out_ref[1:2, :] = sc2                 # row 1 = sc_2


def _scores_kernel(v8_ref, h_pl_ref, h_mi_ref, bias_ref, out_ref):
    _scores_body(v8_ref, h_pl_ref, h_mi_ref, bias_ref, out_ref)


def _scores_kernel_sbias(v8_ref, h_pl_ref, h_mi_ref, sb1_ref, sb2_ref,
                         bias_ref, out_ref):
    _scores_body(v8_ref, h_pl_ref, h_mi_ref, bias_ref, out_ref, sb1_ref, sb2_ref)


def _choose_tile_n(n_rows, n_h, itemsize):
    """Row-tile size: VMEM-safe on all generations, multi-step for megacore."""
    if n_rows <= 128:
        # Single full-extent block (satisfies the (8,128) rule via full dims).
        return n_rows
    # Streaming budget: 2 inputs x 2 pipeline buffers x tile_bytes <= ~8 MiB,
    # i.e. <= 2 MiB per buffer -- fits v5e's 16 MiB default scoped VMEM and
    # leaves ample headroom on v6e/v7x; >= ~1 MiB blocks already reach ~85% of
    # HBM roofline, so this costs ~nothing.
    per_buf_budget = 2 * 1024 * 1024
    cap = max(128, ((per_buf_budget // (n_h * itemsize)) // 128) * 128)
    # Aim for >= ~8 grid steps so megacore sharding (v7x: 2 TCs) and the
    # software pipeline both have independent "parallel" work.
    want = max(128, _round_up(pl.cdiv(n_rows, 8), 128))
    return min(cap, want)


def discriminator_forward(c, h_pl, h_mi, weight, bias, s_bias1=None, s_bias2=None):
    """JAX/Pallas equivalent of Discriminator.forward.

    c: (1, n_h); h_pl/h_mi: (N, n_h); weight: (1, n_h, n_h); bias: (1,);
    s_bias1/s_bias2: optional (N,).  Returns logits of shape (2N,) float32.
    """
    N, n_h = h_pl.shape

    # One-time shared matvec (hoisted; fused into the same jit dispatch):
    #   v[j] = sum_i W[0, j, i] * c[0, i]   ->   sc[n] = h[n, :] . v + bias
    v = jnp.dot(c.astype(jnp.float32),
                jnp.transpose(weight[0]).astype(jnp.float32))          # (1, n_h)
    v8 = jnp.broadcast_to(v, (8, n_h))     # pre-broadcast once (tiny, review item)

    itemsize = max(h_pl.dtype.itemsize, h_mi.dtype.itemsize)
    tile_n = _choose_tile_n(N, n_h, itemsize)
    grid = (pl.cdiv(N, tile_n),)           # ragged tail handled by Pallas (no jnp.pad)

    bias_sc = jnp.reshape(bias, (1, 1)).astype(jnp.float32)

    v_spec = pl.BlockSpec((8, n_h), lambda i: (0, 0))          # grid-invariant, stays in VMEM
    h_spec = pl.BlockSpec((tile_n, n_h), lambda i: (i, 0))     # streamed / double-buffered
    sb_spec = pl.BlockSpec((1, tile_n), lambda i: (0, i))      # lane-major sample biases
    bias_spec = pl.BlockSpec((1, 1), lambda i: (0, 0),
                             memory_space=pltpu.MemorySpace.SMEM)
    out_spec = pl.BlockSpec((2, tile_n), lambda i: (0, i))     # lane-dense (2, N) output

    have_sbias = (s_bias1 is not None) or (s_bias2 is not None)
    if have_sbias:
        def _prep_sb(sb):
            if sb is None:
                return jnp.zeros((1, N), jnp.float32)
            return jnp.reshape(sb, (1, N)).astype(jnp.float32)
        kernel = _scores_kernel_sbias
        in_specs = [v_spec, h_spec, h_spec, sb_spec, sb_spec, bias_spec]
        operands = (v8, h_pl, h_mi, _prep_sb(s_bias1), _prep_sb(s_bias2), bias_sc)
    else:
        # Common DGI path: no s_bias -> no zero arrays materialized or DMA'd.
        kernel = _scores_kernel
        in_specs = [v_spec, h_spec, h_spec, bias_spec]
        operands = (v8, h_pl, h_mi, bias_sc)

    # Explicit scoped-VMEM limit consistent with the tile budget (review item):
    # double-buffered h tiles dominate; out / sb / v8 buffers are tiny.
    tile_bytes = tile_n * n_h * itemsize
    needed = (2 * 2 * tile_bytes                      # h_pl + h_mi double buffers
              + 2 * (2 * tile_n * 4)                  # out double buffers
              + (2 * 2 * (tile_n * 4) if have_sbias else 0)
              + 2 * 8 * n_h * 4                       # v8
              + (1 << 20))                            # margin
    vmem_limit = int(min(32 * 1024 * 1024,
                         max(16 * 1024 * 1024, (needed * 3) // 2)))

    out = pl.pallas_call(
        kernel,
        out_shape=jax.ShapeDtypeStruct((2, N), jnp.float32),
        grid=grid,
        in_specs=in_specs,
        out_specs=out_spec,
        compiler_params=pltpu.CompilerParams(
            dimension_semantics=("parallel",),        # row tiles are independent
            vmem_limit_bytes=vmem_limit),
    )(*operands)

    # Row 0 = sc_1, row 1 = sc_2 -> row-major flatten == torch.cat((sc_1, sc_2), 0).
    return out.reshape(-1)


def _reference_forward(c, h_pl, h_mi, weight, bias, s_bias1=None, s_bias2=None):
    c_x = jnp.broadcast_to(c, h_pl.shape).astype(jnp.float32)
    w0 = weight[0].astype(jnp.float32)
    hp = h_pl.astype(jnp.float32)
    hm = h_mi.astype(jnp.float32)
    hi = lax.Precision.HIGHEST
    sc1 = jnp.einsum('ni,ij,nj->n', hp, w0, c_x, precision=hi) + bias[0]
    sc2 = jnp.einsum('ni,ij,nj->n', hm, w0, c_x, precision=hi) + bias[0]
    if s_bias1 is not None:
        sc1 = sc1 + s_bias1
    if s_bias2 is not None:
        sc2 = sc2 + s_bias2
    return jnp.concatenate([sc1, sc2], axis=0)


def _make_params(key, n_h):
    # Deterministic xavier_uniform_ for the Bilinear weight (1, n_h, n_h):
    # fan_in = n_h * n_h, fan_out = 1 * n_h (PyTorch's fan computation for 3-D).
    fan_in, fan_out = n_h * n_h, 1 * n_h
    bound = (6.0 / (fan_in + fan_out)) ** 0.5
    weight = jax.random.uniform(key, (1, n_h, n_h), jnp.float32, -bound, bound)
    bias = jnp.zeros((1,), jnp.float32)    # bias.data.fill_(0.0)
    return weight, bias


if __name__ == "__main__":
    key = jax.random.PRNGKey(0)
    fwd = jax.jit(discriminator_forward)

    # ---- Small shapes matching the module (hidden=32, N=8 nodes) ----
    n_h, N = 32, 8
    k_w, k_c, k_pl, k_mi, k_b1, k_b2, k_rest = jax.random.split(key, 7)
    weight, bias = _make_params(k_w, n_h)
    c = jax.random.normal(k_c, (1, n_h), jnp.float32)       # summary vector
    h_pl = jax.random.normal(k_pl, (N, n_h), jnp.float32)   # positive embeddings
    h_mi = jax.random.normal(k_mi, (N, n_h), jnp.float32)   # negative embeddings

    # Case 1: common DGI path, s_bias1 = s_bias2 = None.
    logits = jax.block_until_ready(fwd(c, h_pl, h_mi, weight, bias))
    ref = _reference_forward(c, h_pl, h_mi, weight, bias)
    assert logits.shape == (2 * N,)
    assert jnp.allclose(logits, ref, atol=1e-4, rtol=1e-4), (logits, ref)

    # Case 2: with sample biases.
    s_bias1 = jax.random.normal(k_b1, (N,), jnp.float32)
    s_bias2 = jax.random.normal(k_b2, (N,), jnp.float32)
    logits2 = jax.block_until_ready(fwd(c, h_pl, h_mi, weight, bias, s_bias1, s_bias2))
    ref2 = _reference_forward(c, h_pl, h_mi, weight, bias, s_bias1, s_bias2)
    assert jnp.allclose(logits2, ref2, atol=1e-4, rtol=1e-4), (logits2, ref2)

    # Case 3: bf16 embeddings stay bf16 in HBM and feed the MXU directly; only
    # the tiny shared vector v is quantized to bf16 in-kernel, so compare
    # against the f32 reference with a bf16-appropriate tolerance.
    h_pl_bf = h_pl.astype(jnp.bfloat16)
    h_mi_bf = h_mi.astype(jnp.bfloat16)
    logits3 = jax.block_until_ready(fwd(c, h_pl_bf, h_mi_bf, weight, bias))
    ref3 = _reference_forward(c, h_pl_bf, h_mi_bf, weight, bias)
    assert jnp.allclose(logits3, ref3, atol=2e-2, rtol=2e-2), (logits3, ref3)

    # Case 4: multi-tile grid with a ragged tail (N not a multiple of the 128-row
    # tile) exercising the pad-free edge-block path + sample biases.
    n_h2, N2 = 64, 300
    k2 = jax.random.split(k_rest, 6)
    weight2, bias2 = _make_params(k2[0], n_h2)
    c2 = jax.random.normal(k2[1], (1, n_h2), jnp.float32)
    h_pl2 = jax.random.normal(k2[2], (N2, n_h2), jnp.float32)
    h_mi2 = jax.random.normal(k2[3], (N2, n_h2), jnp.float32)
    sb1_2 = jax.random.normal(k2[4], (N2,), jnp.float32)
    sb2_2 = jax.random.normal(k2[5], (N2,), jnp.float32)
    logits4 = jax.block_until_ready(fwd(c2, h_pl2, h_mi2, weight2, bias2, sb1_2, sb2_2))
    ref4 = _reference_forward(c2, h_pl2, h_mi2, weight2, bias2, sb1_2, sb2_2)
    assert logits4.shape == (2 * N2,)
    assert jnp.allclose(logits4, ref4, atol=2e-3, rtol=2e-3), \
        float(jnp.max(jnp.abs(logits4 - ref4)))

    print("KERNEL_OK")
</pallas_src>

<mosaic_0001>
module attributes {stable_mosaic.version = 11 : i64} {
  func.func @_scores_kernel(%arg0: i32, %arg1: memref<8x32xf32, #tpu.memory_space<vmem>>, %arg2: memref<8x32xf32, #tpu.memory_space<vmem>>, %arg3: memref<8x32xf32, #tpu.memory_space<vmem>>, %arg4: memref<1x1xf32, #tpu.memory_space<smem>>, %arg5: memref<2x8xf32, #tpu.memory_space<vmem>>) attributes {dimension_semantics = [#tpu.dimension_semantics<parallel>], iteration_bounds = array<i64: 1>, scalar_prefetch = 0 : i64, scratch_operands = 0 : i64, tpu.core_type = #tpu.core_type<tc>, window_params = [{pipeline_mode = #tpu.pipeline_mode<synchronous>, transform_indices = @transform_0, window_bounds = array<i64: 8, 32>}, {transform_indices = @transform_1, window_bounds = array<i64: 8, 32>}, {transform_indices = @transform_2, window_bounds = array<i64: 8, 32>}, {transform_indices = @transform_3, window_bounds = array<i64: 1, 1>}, {transform_indices = @transform_4, window_bounds = array<i64: 2, 8>}]} {
    %c0 = arith.constant 0 : index
    %c0_0 = arith.constant 0 : index
    %0 = vector.load %arg1[%c0, %c0_0] : memref<8x32xf32, #tpu.memory_space<vmem>>, vector<8x32xf32>
    %c0_1 = arith.constant 0 : index
    %c0_2 = arith.constant 0 : index
    %1 = memref.load %arg4[%c0_1, %c0_2] : memref<1x1xf32, #tpu.memory_space<smem>>
    %c0_3 = arith.constant 0 : index
    %c0_4 = arith.constant 0 : index
    %2 = vector.load %arg2[%c0_3, %c0_4] : memref<8x32xf32, #tpu.memory_space<vmem>>, vector<8x32xf32>
    %cst = arith.constant dense<0.000000e+00> : vector<8x8xf32>
    %3 = tpu.matmul %0, %2, %cst {dimension_numbers = #tpu.dot_dimension_numbers<[1], [1], [0], [0], [0, 0, 1, 0], [], []>} : vector<8x32xf32>, vector<8x32xf32>, vector<8x8xf32> -> vector<8x8xf32>
    %4 = vector.extract_strided_slice %3 {offsets = [0, 0], sizes = [1, 8], strides = [1, 1]} : vector<8x8xf32> to vector<1x8xf32>
    %5 = vector.broadcast %1 : f32 to vector<1x8xf32>
    %6 = arith.addf %4, %5 : vector<1x8xf32>
    %c0_5 = arith.constant 0 : index
    %c0_6 = arith.constant 0 : index
    %7 = vector.load %arg3[%c0_5, %c0_6] : memref<8x32xf32, #tpu.memory_space<vmem>>, vector<8x32xf32>
    %cst_7 = arith.constant dense<0.000000e+00> : vector<8x8xf32>
    %8 = tpu.matmul %0, %7, %cst_7 {dimension_numbers = #tpu.dot_dimension_numbers<[1], [1], [0], [0], [0, 0, 1, 0], [], []>} : vector<8x32xf32>, vector<8x32xf32>, vector<8x8xf32> -> vector<8x8xf32>
    %9 = vector.extract_strided_slice %8 {offsets = [0, 0], sizes = [1, 8], strides = [1, 1]} : vector<8x8xf32> to vector<1x8xf32>
    %10 = vector.broadcast %1 : f32 to vector<1x8xf32>
    %11 = arith.addf %9, %10 : vector<1x8xf32>
    %c0_8 = arith.constant 0 : index
    %c0_9 = arith.constant 0 : index
    %12 = vector.load %arg5[%c0_8, %c0_9] : memref<2x8xf32, #tpu.memory_space<vmem>>, vector<1x8xf32>
    tpu.vector_store %arg5[%c0_8, %c0_9], %6 {strides = array<i32>} : memref<2x8xf32, #tpu.memory_space<vmem>>, vector<1x8xf32>,
    %c1 = arith.constant 1 : index
    %c0_10 = arith.constant 0 : index
    %13 = vector.load %arg5[%c1, %c0_10] : memref<2x8xf32, #tpu.memory_space<vmem>>, vector<1x8xf32>
    tpu.vector_store %arg5[%c1, %c0_10], %11 {strides = array<i32>} : memref<2x8xf32, #tpu.memory_space<vmem>>, vector<1x8xf32>,
    return
  }
  func.func @transform_0(%arg0: i32) -> (i32, i32) {
    %c0_i32 = arith.constant 0 : i32
    %c0_i32_0 = arith.constant 0 : i32
    %c0_i32_1 = arith.constant 0 : i32
    return %c0_i32, %c0_i32_0 : i32, i32
  }
  func.func @transform_1(%arg0: i32) -> (i32, i32) {
    %c0_i32 = arith.constant 0 : i32
    %c0_i32_0 = arith.constant 0 : i32
    return %arg0, %c0_i32 : i32, i32
  }
  func.func @transform_2(%arg0: i32) -> (i32, i32) {
    %c0_i32 = arith.constant 0 : i32
    %c0_i32_0 = arith.constant 0 : i32
    return %arg0, %c0_i32 : i32, i32
  }
  func.func @transform_3(%arg0: i32) -> (i32, i32) {
    %c0_i32 = arith.constant 0 : i32
    %c0_i32_0 = arith.constant 0 : i32
    %c0_i32_1 = arith.constant 0 : i32
    return %c0_i32, %c0_i32_0 : i32, i32
  }
  func.func @transform_4(%arg0: i32) -> (i32, i32) {
    %c0_i32 = arith.constant 0 : i32
    %c0_i32_0 = arith.constant 0 : i32
    return %c0_i32, %arg0 : i32, i32
  }
}

</mosaic_0001>

<llo_original>
// kernel: discriminator_forward.1
$region0: #{discriminator_forward.1}
  #allocation0 [shape = 'u32[]', space=smem, size = 0x4, offset = 0x4, fixed_abs, tag = 'smem constant byte address 0x4 - core index']
  #allocation1 [shape = 'u32[144,128]{1,0:T(1,128)}', space=vmem, size = 0x12000, scoped, tag = 'internal scratch']
  #allocation2 [shape = 'f32[1,1]{1,0:T(1,128)S(6)}', space=smem, size = 0x200, scoped, tag = 'scoped memory for discriminator_forward.1']
  %s0 = inlined_call_operand.vmem [shape: f32[8,32], index: 0, kind: input, shape index: {}]
  %s1 = inlined_call_operand.vmem [shape: f32[8,32], index: 1, kind: input, shape index: {}]
  %s2 = inlined_call_operand.vmem [shape: f32[8,32], index: 2, kind: input, shape index: {}]
  %s3 = inlined_call_operand.<no memory space> [shape: f32[1,1], index: 3, kind: input, shape index: {}]
  %s4 = inlined_call_operand.vmem [shape: f32[2,8], index: 4, kind: output, shape index: {}]
  %s5 = sld [smem:[#allocation0]]
  $region26: #{discriminator_forward.1} parent=0
    _
  %s7 = ssub.s32 1, %s5
  %s8 = scalar_select 0, %s7, %s5
  %9 = sst [smem:[#allocation2]] %s3
  // Predicated region
  $region2: #{discriminator_forward.1} parent=0 // pred_check
    _
  $region3: #{discriminator_forward.1} parent=0 // pred_check_branch
    %11 = sbr.rel (0) target = $region5
  $region4: #{discriminator_forward.1} parent=0 // pred_region
    _
  $region5: #{discriminator_forward.1} parent=0 // pred_fallthru
    _
  // Predicated region
  $region6: #{discriminator_forward.1} parent=0 // pred_check
    _
  $region7: #{discriminator_forward.1} parent=0 // pred_check_branch
    %13 = sbr.rel (0) target = $region9
  $region8: #{discriminator_forward.1} parent=0 // pred_region
    _
  $region9: #{discriminator_forward.1} parent=0 // pred_fallthru
    _
  // Predicated region
  $region10: #{discriminator_forward.1} parent=0 // pred_check
    _
  $region11: #{discriminator_forward.1} parent=0 // pred_check_branch
    %15 = sbr.rel (0) target = $region13
  $region12: #{discriminator_forward.1} parent=0 // pred_region
    _
  $region13: #{discriminator_forward.1} parent=0 // pred_fallthru
    _
  // Predicated region
  $region14: #{discriminator_forward.1} parent=0 // pred_check
    _
  $region15: #{discriminator_forward.1} parent=0 // pred_check_branch
    %17 = sbr.rel (0) target = $region17
  $region16: #{discriminator_forward.1} parent=0 // pred_region
    _
  $region17: #{discriminator_forward.1} parent=0 // pred_fallthru
    _
  %v18 = vld [vmem:[%s0] sm:$0xff]
  %s19 = sld [smem:[#allocation2]]
  %v20 = vld [vmem:[%s1] sm:$0xff]
  %vm21 = vcmask 261120
  %v23 = vsel %vm21, %v18, 0
  %v26 = vsel %vm21, %v20, 0
  %28 = vmatprep.subr.mxu0 0.0
  %29 = vmatpush1.xpose.msra.mxu0 %v26
  %30 = vmatprep.subr.mxu0 0.0
  %31 = vmatpush1.xpose.msra.mxu0 0.0
  %32 = vmatprep.subr.mxu0 0.0
  %33 = vmatpush1.xpose.msra.mxu0 0.0
  %34 = vmatprep.subr.mxu0 0.0
  %35 = vmatpush1.xpose.msra.mxu0 0.0
  %36 = vmatprep.subr.mxu0 0.0
  %37 = vmatpush1.xpose.msra.mxu0 0.0
  %38 = vmatprep.subr.mxu0 0.0
  %39 = vmatpush1.xpose.msra.mxu0 0.0
  %40 = vmatprep.subr.mxu0 0.0
  %41 = vmatpush1.xpose.msra.mxu0 0.0
  %42 = vmatprep.subr.mxu0 0.0
  %43 = vmatpush1.xpose.msra.mxu0 0.0
  %44 = vmatprep.subr.mxu0 0.0
  %45 = vmatpush1.xpose.msra.mxu0 0.0
  %46 = vmatprep.subr.mxu0 0.0
  %47 = vmatpush1.xpose.msra.mxu0 0.0
  %48 = vmatprep.subr.mxu0 0.0
  %49 = vmatpush1.xpose.msra.mxu0 0.0
  %50 = vmatprep.subr.mxu0 0.0
  %51 = vmatpush1.xpose.msra.mxu0 0.0
  %52 = vmatprep.subr.mxu0 0.0
  %53 = vmatpush1.xpose.msra.mxu0 0.0
  %54 = vmatprep.subr.mxu0 0.0
  %55 = vmatpush1.xpose.msra.mxu0 0.0
  %56 = vmatprep.subr.mxu0 0.0
  %57 = vmatpush1.xpose.msra.mxu0 0.0
  %58 = vmatprep.subr.mxu0 0.0
  %59 = vmatpush1.xpose.msra.mxu0 0.0
  %60 = vmatprep.subr.mxu0 0.0
  %61 = vmatpush1.xpose.msra.mxu0 0.0
  %62 = vmatprep.subr.mxu0 0.0
  %63 = vmatpush1.xpose.msra.mxu0 0.0
  %64 = vmatprep.subr.mxu0 0.0
  %65 = vmatpush1.xpose.msra.mxu0 0.0
  %66 = vmatprep.subr.mxu0 0.0
  %67 = vmatpush1.xpose.msra.mxu0 0.0
  %68 = vmatprep.subr.mxu0 0.0
  %69 = vmatpush1.xpose.msra.mxu0 0.0
  %70 = vmatprep.subr.mxu0 0.0
  %71 = vmatpush1.xpose.msra.mxu0 0.0
  %72 = vmatprep.subr.mxu0 0.0
  %73 = vmatpush1.xpose.msra.mxu0 0.0
  %74 = vmatprep.subr.mxu0 0.0
  %75 = vmatpush1.xpose.msra.mxu0 0.0
  %76 = vmatprep.subr.mxu0 0.0
  %77 = vmatpush1.xpose.msra.mxu0 0.0
  %78 = vmatprep.subr.mxu0 0.0
  %79 = vmatpush1.xpose.msra.mxu0 0.0
  %80 = vmatprep.subr.mxu0 0.0
  %81 = vmatpush1.xpose.msra.mxu0 0.0
  %82 = vmatprep.subr.mxu0 0.0
  %83 = vmatpush1.xpose.msra.mxu0 0.0
  %84 = vmatprep.subr.mxu0 0.0
  %85 = vmatpush1.xpose.msra.mxu0 0.0
  %86 = vmatprep.subr.mxu0 0.0
  %87 = vmatpush1.xpose.msra.mxu0 0.0
  %88 = vmatprep.subr.mxu0 0.0
  %89 = vmatpush1.xpose.msra.mxu0 0.0
  %90 = vmatprep.subr.mxu0 0.0
  %91 = vmatpush1.xpose.msra.mxu0 0.0
  %92 = vmatprep.mubr.f32.mxu0 0.0
  %93 = vmatmul.mubr.f32.gmra.mrb[0].mxu0 %v23
  %v94 = vpop.f32.mrb[0].mxu0
  %v95 = vadd.f32 0.0, %v94
  %v96 = vpop.f32.mrb[0].mxu0
  %97 = vdwg.mxu0
  %v98 = vstv %s19
  %v99 = vadd.f32 %v95, %v98
  %v100 = vld [vmem:[%s2] sm:$0xff]
  %v102 = vsel %vm21, %v100, 0
  %104 = vmatprep.subr.mxu0 0.0
  %105 = vmatpush1.xpose.msra.mxu0 %v102
  %106 = vmatprep.subr.mxu0 0.0
  %107 = vmatpush1.xpose.msra.mxu0 0.0
  %108 = vmatprep.subr.mxu0 0.0
  %109 = vmatpush1.xpose.msra.mxu0 0.0
  %110 = vmatprep.subr.mxu0 0.0
  %111 = vmatpush1.xpose.msra.mxu0 0.0
  %112 = vmatprep.subr.mxu0 0.0
  %113 = vmatpush1.xpose.msra.mxu0 0.0
  %114 = vmatprep.subr.mxu0 0.0
  %115 = vmatpush1.xpose.msra.mxu0 0.0
  %116 = vmatprep.subr.mxu0 0.0
  %117 = vmatpush1.xpose.msra.mxu0 0.0
  %118 = vmatprep.subr.mxu0 0.0
  %119 = vmatpush1.xpose.msra.mxu0 0.0
  %120 = vmatprep.subr.mxu0 0.0
  %121 = vmatpush1.xpose.msra.mxu0 0.0
  %122 = vmatprep.subr.mxu0 0.0
  %123 = vmatpush1.xpose.msra.mxu0 0.0
  %124 = vmatprep.subr.mxu0 0.0
  %125 = vmatpush1.xpose.msra.mxu0 0.0
  %126 = vmatprep.subr.mxu0 0.0
  %127 = vmatpush1.xpose.msra.mxu0 0.0
  %128 = vmatprep.subr.mxu0 0.0
  %129 = vmatpush1.xpose.msra.mxu0 0.0
  %130 = vmatprep.subr.mxu0 0.0
  %131 = vmatpush1.xpose.msra.mxu0 0.0
  %132 = vmatprep.subr.mxu0 0.0
  %133 = vmatpush1.xpose.msra.mxu0 0.0
  %134 = vmatprep.subr.mxu0 0.0
  %135 = vmatpush1.xpose.msra.mxu0 0.0
  %136 = vmatprep.subr.mxu0 0.0
  %137 = vmatpush1.xpose.msra.mxu0 0.0
  %138 = vmatprep.subr.mxu0 0.0
  %139 = vmatpush1.xpose.msra.mxu0 0.0
  %140 = vmatprep.subr.mxu0 0.0
  %141 = vmatpush1.xpose.msra.mxu0 0.0
  %142 = vmatprep.subr.mxu0 0.0
  %143 = vmatpush1.xpose.msra.mxu0 0.0
  %144 = vmatprep.subr.mxu0 0.0
  %145 = vmatpush1.xpose.msra.mxu0 0.0
  %146 = vmatprep.subr.mxu0 0.0
  %147 = vmatpush1.xpose.msra.mxu0 0.0
  %148 = vmatprep.subr.mxu0 0.0
  %149 = vmatpush1.xpose.msra.mxu0 0.0
  %150 = vmatprep.subr.mxu0 0.0
  %151 = vmatpush1.xpose.msra.mxu0 0.0
  %152 = vmatprep.subr.mxu0 0.0
  %153 = vmatpush1.xpose.msra.mxu0 0.0
  %154 = vmatprep.subr.mxu0 0.0
  %155 = vmatpush1.xpose.msra.mxu0 0.0
  %156 = vmatprep.subr.mxu0 0.0
  %157 = vmatpush1.xpose.msra.mxu0 0.0
  %158 = vmatprep.subr.mxu0 0.0
  %159 = vmatpush1.xpose.msra.mxu0 0.0
  %160 = vmatprep.subr.mxu0 0.0
  %161 = vmatpush1.xpose.msra.mxu0 0.0
  %162 = vmatprep.subr.mxu0 0.0
  %163 = vmatpush1.xpose.msra.mxu0 0.0
  %164 = vmatprep.subr.mxu0 0.0
  %165 = vmatpush1.xpose.msra.mxu0 0.0
  %166 = vmatprep.subr.mxu0 0.0
  %167 = vmatpush1.xpose.msra.mxu0 0.0
  %168 = vmatprep.mubr.f32.mxu0 0.0
  %169 = vmatmul.mubr.f32.gmra.mrb[0].mxu0 %v23
  %v170 = vpop.f32.mrb[0].mxu0
  %v171 = vadd.f32 0.0, %v170
  %v172 = vpop.f32.mrb[0].mxu0
  %173 = vdwg.mxu0
  %v174 = vadd.f32 %v171, %v98
  %vm175 = vcmask 57344
  %176 = vst.msk [vmem:[%s4] sm:$0x1] %vm175, %v99
  %177 = vst.msk [vmem:[%s4 + $0x1] sm:$0x1] %vm175, %v174
  // Predicated region
  $region18: #{discriminator_forward.1} parent=0 // pred_check
    _
  $region19: #{discriminator_forward.1} parent=0 // pred_check_branch
    %179 = sbr.rel (0) target = $region21
  $region20: #{discriminator_forward.1} parent=0 // pred_region
    _
  $region21: #{discriminator_forward.1} parent=0 // pred_fallthru
    _
  // Predicated region
  $region22: #{discriminator_forward.1} parent=0 // pred_check
    _
  $region23: #{discriminator_forward.1} parent=0 // pred_check_branch
    %181 = sbr.rel (0) target = $region25
  $region24: #{discriminator_forward.1} parent=0 // pred_region
    _
  $region25: #{discriminator_forward.1} parent=0 // pred_fallthru
    _

</llo_original>
